<compile_context>
chip_gen: v6e
topology: v6e:2x2x1
jax: 0.10.0
libtpu: 0.0.40
codegen_flags: <defaults>
</compile_context>

<pallas_src>
import jax
import jax.numpy as jnp
from jax.experimental import pallas as pl
from jax.experimental.pallas import tpu as pltpu


# Explicit scoped-VMEM budget (raises v5e's 16 MiB default; all blocks here
# are KB-scale so this is headroom, not a requirement).
_VMEM_LIMIT = 32 * 1024 * 1024


# ----------------------------------------------------------------------------
# Kernel 1: complex spectral channel mixing  einsum('bixt,ijxt->bjxt')
# Single grid step.  Lane axis = [re | im] x [batch] x (modes_x*modes_t),
# i.e. width 2*B*L (>=128).  Complex mul expressed as 2*Ci broadcast-FMAs on
# the VPU over the full-width slab (weights depend on (x,t), so it is not a
# plain matmul).
# ----------------------------------------------------------------------------
def _spectral_mix_kernel(za_ref, zb_ref, wa_ref, wb_ref, o_ref):
    ci = za_ref.shape[0]
    za = za_ref[...]                              # (Ci, 2*B*L)  = re tiled x2
    zb = zb_ref[...]                              # (Ci, 2*B*L)  = im tiled x2
    wa = wa_ref[...]                              # (Ci, Cj, 2*B*L) = [wr | wi]
    wb = wb_ref[...]                              # (Ci, Cj, 2*B*L) = [-wi | wr]
    acc = jnp.zeros(o_ref.shape, jnp.float32)     # (Cj, 2*B*L) = [o_r | o_i]
    for i in range(ci):
        acc = acc + za[i:i + 1, :] * wa[i] + zb[i:i + 1, :] * wb[i]
    o_ref[...] = acc


def pack_spectral_weights(wr, wi, batch):
    """Pack (Ci, Cj, Mx, Mt) real/imag weights into the lane-dense layout used
    by _spectral_mix_kernel: (Ci, Cj, 2*B*L) with lanes [wr|wi] / [-wi|wr],
    each half tiled over the batch."""
    ci, cj = wr.shape[:2]
    L = wr.shape[2] * wr.shape[3]
    wr_f = jnp.tile(wr.reshape(ci, cj, L), (1, 1, batch))    # (Ci, Cj, B*L)
    wi_f = jnp.tile(wi.reshape(ci, cj, L), (1, 1, batch))
    wa = jnp.concatenate([wr_f, wi_f], axis=-1)              # (Ci, Cj, 2*B*L)
    wb = jnp.concatenate([-wi_f, wr_f], axis=-1)
    return wa, wb


def spectral_channel_mul(zr, zi, wa, wb):
    """Complex einsum('bixt,ijxt->bjxt') on (real, imag) float32 parts.
    wa/wb are the packed weights from pack_spectral_weights."""
    B, Ci, Mx, Mt = zr.shape
    Cj = wa.shape[1]
    L = Mx * Mt
    BL = B * L
    # Fold batch into the lane axis: (B, Ci, L) -> (Ci, B*L)
    zr_f = zr.reshape(B, Ci, L).transpose(1, 0, 2).reshape(Ci, BL)
    zi_f = zi.reshape(B, Ci, L).transpose(1, 0, 2).reshape(Ci, BL)
    # Duplicate along lanes so each input row covers both the re and im halves
    # of the output slab.
    za = jnp.concatenate([zr_f, zr_f], axis=-1)              # (Ci, 2*B*L)
    zb = jnp.concatenate([zi_f, zi_f], axis=-1)
    out = pl.pallas_call(
        _spectral_mix_kernel,
        out_shape=jax.ShapeDtypeStruct((Cj, 2 * BL), jnp.float32),
        grid=(1,),
        in_specs=[
            pl.BlockSpec((Ci, 2 * BL), lambda i: (0, 0)),
            pl.BlockSpec((Ci, 2 * BL), lambda i: (0, 0)),
            pl.BlockSpec((Ci, Cj, 2 * BL), lambda i: (0, 0, 0)),
            pl.BlockSpec((Ci, Cj, 2 * BL), lambda i: (0, 0, 0)),
        ],
        out_specs=pl.BlockSpec((Cj, 2 * BL), lambda i: (0, 0)),
        compiler_params=pltpu.CompilerParams(
            dimension_semantics=("arbitrary",),
            vmem_limit_bytes=_VMEM_LIMIT),
    )(za, zb, wa, wb)
    o_r = out[:, :BL].reshape(Cj, B, L).transpose(1, 0, 2).reshape(B, Cj, Mx, Mt)
    o_i = out[:, BL:].reshape(Cj, B, L).transpose(1, 0, 2).reshape(B, Cj, Mx, Mt)
    return o_r, o_i


# ----------------------------------------------------------------------------
# Kernel 2: fixed-point RHS  H = F(z) + sum_c G(z)[:, :, c] * xi[:, c]
# (synthetic spde_func: F = tanh(Wf z + bf), G = tanh(Wg z + bg) reshaped)
# Single grid step, batch folded into lanes (B*X*T wide).  Wf and the Cf Wg
# matrices are stacked so the whole channel mix is ONE (Ch*(1+Cf), Ch) matmul,
# one bias add and one tanh, followed by Cf broadcast-FMAs with xi.
# ----------------------------------------------------------------------------
def _spde_rhs_kernel(z_ref, xi_ref, w_ref, b_ref, h_ref):
    ch = h_ref.shape[0]
    cf = xi_ref.shape[0]
    # One stacked MXU matmul ((1+Cf)*Ch, Ch) @ (Ch, B*L), one column-broadcast
    # bias, one EUP tanh pass over the whole slab.
    a = jnp.tanh(
        jnp.dot(w_ref[...], z_ref[...], preferred_element_type=jnp.float32)
        + b_ref[...])
    h = a[:ch]                                    # F(z)
    xi = xi_ref[...]                              # (Cf, B*L)
    for c in range(cf):
        h = h + a[ch * (1 + c):ch * (2 + c)] * xi[c:c + 1, :]
    h_ref[...] = h


def pack_rhs_weights(wf, bf, wg, bg):
    """Stack Wf and the per-forcing-channel Wg blocks into one weight matrix.
    wg rows are indexed k = j*Cf + c (PyTorch layout)."""
    ch = wf.shape[0]
    cf = wg.shape[0] // ch
    wg3 = wg.reshape(ch, cf, ch).transpose(1, 0, 2)          # (Cf, Ch, Ch)
    bg2 = bg.reshape(ch, cf).T                               # (Cf, Ch)
    w_all = jnp.concatenate([wf, wg3.reshape(cf * ch, ch)], axis=0)
    b_all = jnp.concatenate([bf, bg2.reshape(cf * ch)], axis=0)[:, None]
    return w_all, b_all                                      # ((1+Cf)Ch, Ch), ((1+Cf)Ch, 1)


def spde_rhs(z, xi, w_all, b_all):
    B, Ch, X, T = z.shape
    Cf = xi.shape[1]
    L = X * T
    BL = B * L
    z2 = z.reshape(B, Ch, L).transpose(1, 0, 2).reshape(Ch, BL)
    xi2 = xi.reshape(B, Cf, L).transpose(1, 0, 2).reshape(Cf, BL)
    h = pl.pallas_call(
        _spde_rhs_kernel,
        out_shape=jax.ShapeDtypeStruct((Ch, BL), jnp.float32),
        grid=(1,),
        in_specs=[
            pl.BlockSpec((Ch, BL), lambda i: (0, 0)),
            pl.BlockSpec((Cf, BL), lambda i: (0, 0)),
            pl.BlockSpec(w_all.shape, lambda i: (0, 0)),
            pl.BlockSpec(b_all.shape, lambda i: (0, 0)),
        ],
        out_specs=pl.BlockSpec((Ch, BL), lambda i: (0, 0)),
        compiler_params=pltpu.CompilerParams(
            dimension_semantics=("arbitrary",),
            vmem_limit_bytes=_VMEM_LIMIT),
    )(z2, xi2, w_all, b_all)
    return h.reshape(Ch, B, L).transpose(1, 0, 2).reshape(B, Ch, X, T)


# ----------------------------------------------------------------------------
# KernelConvolution (1D-space + time case): FFT glue in JAX, mixing in Pallas
# ----------------------------------------------------------------------------
def conv_apply(z, wa, wb, modes1, modes2):
    """Non-init path: 2D FFT over (x, t), spectral mixing, inverse FFT."""
    B, C, X, T = z.shape
    fx = (X // 2 - modes1 // 2, X // 2 + modes1 // 2)
    ft = (T // 2 - modes2 // 2, T // 2 + modes2 // 2)
    z_ft = jnp.fft.fftshift(jnp.fft.fftn(z, axes=(2, 3)), axes=(2, 3))
    zs = z_ft[:, :, fx[0]:fx[1], ft[0]:ft[1]]
    o_r, o_i = spectral_channel_mul(
        jnp.real(zs).astype(jnp.float32), jnp.imag(zs).astype(jnp.float32),
        wa, wb)
    out_ft = jnp.zeros((B, C, X, T), jnp.complex64)
    out_ft = out_ft.at[:, :, fx[0]:fx[1], ft[0]:ft[1]].set(
        (o_r + 1j * o_i).astype(jnp.complex64))
    out_ft = jnp.fft.ifftshift(out_ft, axes=(2, 3))
    return jnp.real(jnp.fft.ifftn(out_ft, axes=(2, 3))).astype(jnp.float32)


def conv_init_apply(z0_path, wa_init, wb_init, modes1):
    """Init path: FFT only over x, mix against time-domain kernel weights."""
    B, C, X, T = z0_path.shape
    fx = (X // 2 - modes1 // 2, X // 2 + modes1 // 2)
    z_ft = jnp.fft.fftshift(jnp.fft.fftn(z0_path, axes=(2,)), axes=(2,))
    zs = z_ft[:, :, fx[0]:fx[1], :]
    o_r, o_i = spectral_channel_mul(
        jnp.real(zs).astype(jnp.float32), jnp.imag(zs).astype(jnp.float32),
        wa_init, wb_init)
    out_ft = jnp.zeros((B, C, X, T), jnp.complex64)
    out_ft = out_ft.at[:, :, fx[0]:fx[1], :].set(
        (o_r + 1j * o_i).astype(jnp.complex64))
    out_ft = jnp.fft.ifftshift(out_ft, axes=(2,))
    return jnp.real(jnp.fft.ifftn(out_ft, axes=(2,))).astype(jnp.float32)


# ----------------------------------------------------------------------------
# NeuralFixedPoint forward (1D case)
# ----------------------------------------------------------------------------
def neural_fixed_point(z0, xi, params, n_iter, modes1, modes2):
    B = xi.shape[0]
    T = xi.shape[-1]

    # ---- precompute loop-invariant packed weights (once per forward) ----
    wa, wb = pack_spectral_weights(params["wr"], params["wi"], B)
    w = (params["wr"] + 1j * params["wi"]).astype(jnp.complex64)
    wt = jnp.fft.ifftn(jnp.fft.ifftshift(w, axes=(-1,)), s=(T,), axes=(-1,))
    wa_init, wb_init = pack_spectral_weights(
        jnp.real(wt).astype(jnp.float32), jnp.imag(wt).astype(jnp.float32), B)
    w_all, b_all = pack_rhs_weights(params["wf"], params["bf"],
                                    params["wg"], params["bg"])

    z0_path = jnp.repeat(z0[..., None], T, axis=-1)             # (B, Ch, X, T)
    z0_path = conv_init_apply(z0_path, wa_init, wb_init, modes1)
    z = z0_path
    y = z0_path
    for _ in range(n_iter):
        H = spde_rhs(z, xi, w_all, b_all)
        # Residual add left to XLA: it fuses into the IFFT epilogue for free.
        y = z0_path + conv_apply(H, wa, wb, modes1, modes2)
        z = y
    return y


# ----------------------------------------------------------------------------
# Pure-JAX reference (mirrors the PyTorch module semantics exactly)
# ----------------------------------------------------------------------------
def neural_fixed_point_ref(z0, xi, params, n_iter, modes1, modes2):
    hi = jax.lax.Precision.HIGHEST
    w = params["wr"] + 1j * params["wi"]

    def conv(z, init):
        B, C, X, T = z.shape
        fx = (X // 2 - modes1 // 2, X // 2 + modes1 // 2)
        ft = (T // 2 - modes2 // 2, T // 2 + modes2 // 2)
        if not init:
            z_ft = jnp.fft.fftshift(jnp.fft.fftn(z, axes=(2, 3)), axes=(2, 3))
            zs = z_ft[:, :, fx[0]:fx[1], ft[0]:ft[1]]
            o = jnp.einsum("bixt,ijxt->bjxt", zs, w.astype(jnp.complex64),
                           precision=hi)
            out_ft = jnp.zeros((B, C, X, T), jnp.complex64).at[
                :, :, fx[0]:fx[1], ft[0]:ft[1]].set(o)
            out_ft = jnp.fft.ifftshift(out_ft, axes=(2, 3))
            return jnp.real(jnp.fft.ifftn(out_ft, axes=(2, 3)))
        else:
            wt = jnp.fft.ifftn(jnp.fft.ifftshift(w, axes=(-1,)),
                               s=(T,), axes=(-1,))
            z_ft = jnp.fft.fftshift(jnp.fft.fftn(z, axes=(2,)), axes=(2,))
            zs = z_ft[:, :, fx[0]:fx[1], :]
            o = jnp.einsum("bixt,ijxt->bjxt", zs, wt, precision=hi)
            out_ft = jnp.zeros((B, C, X, T), jnp.complex64).at[
                :, :, fx[0]:fx[1], :].set(o)
            out_ft = jnp.fft.ifftshift(out_ft, axes=(2,))
            return jnp.real(jnp.fft.ifftn(out_ft, axes=(2,)))

    def spde(z):
        B, Ch, X, T = z.shape
        Cf = xi.shape[1]
        F = jnp.tanh(jnp.einsum("ji,bixt->bjxt", params["wf"], z, precision=hi)
                     + params["bf"][None, :, None, None])
        G = jnp.tanh(jnp.einsum("ki,bixt->bkxt", params["wg"], z, precision=hi)
                     + params["bg"][None, :, None, None])
        G = G.reshape(B, Ch, Cf, X, T)
        return F, G

    T = xi.shape[-1]
    z0_path = jnp.repeat(z0[..., None], T, axis=-1)
    z0_path = conv(z0_path, init=True)
    z = z0_path
    y = z0_path
    for _ in range(n_iter):
        F_z, G_z = spde(z)
        G_z_xi = jnp.einsum("abcxt,acxt->abxt", G_z, xi, precision=hi)
        H = F_z + G_z_xi
        y = z0_path + conv(H, init=False)
        z = y
    return y


# ----------------------------------------------------------------------------
if __name__ == "__main__":
    # small shapes consistent with the module (1D spatial case)
    B, Ch, Cf = 2, 4, 3          # batch, hidden channels, forcing channels
    X, T = 16, 8                 # dim_x, dim_t   (X*T*B = 256 lanes per row)
    MODES1, MODES2 = 8, 4        # spectral modes (space, time)
    N_ITER = 3

    key = jax.random.PRNGKey(0)
    k_z0, k_xi, k_wr, k_wi, k_wf, k_bf, k_wg, k_bg = jax.random.split(key, 8)

    z0 = jax.random.normal(k_z0, (B, Ch, X), dtype=jnp.float32)
    xi = 0.1 * jax.random.normal(k_xi, (B, Cf, X, T), dtype=jnp.float32)

    # KernelConvolution weights: scale * rand(C, C, modes1, modes2, cfloat)
    scale = 1.0 / (Ch ** 2)
    params = {
        "wr": scale * jax.random.uniform(k_wr, (Ch, Ch, MODES1, MODES2),
                                         dtype=jnp.float32),
        "wi": scale * jax.random.uniform(k_wi, (Ch, Ch, MODES1, MODES2),
                                         dtype=jnp.float32),
        # synthetic spde_func parameters (1x1 channel convs + tanh)
        "wf": 0.3 * jax.random.normal(k_wf, (Ch, Ch), dtype=jnp.float32),
        "bf": 0.1 * jax.random.normal(k_bf, (Ch,), dtype=jnp.float32),
        "wg": 0.3 * jax.random.normal(k_wg, (Ch * Cf, Ch), dtype=jnp.float32),
        "bg": 0.1 * jax.random.normal(k_bg, (Ch * Cf,), dtype=jnp.float32),
    }

    run = jax.jit(lambda a, b: neural_fixed_point(a, b, params, N_ITER,
                                                  MODES1, MODES2))
    run_ref = jax.jit(lambda a, b: neural_fixed_point_ref(a, b, params, N_ITER,
                                                          MODES1, MODES2))

    y = jax.block_until_ready(run(z0, xi))
    y_ref = jax.block_until_ready(run_ref(z0, xi))

    err = float(jnp.max(jnp.abs(y - y_ref)))
    if err > 2e-3:
        raise AssertionError(f"Pallas output mismatch vs reference: {err}")

    print("KERNEL_OK")
</pallas_src>

<mosaic_0001>
module attributes {stable_mosaic.version = 11 : i64} {
  func.func @_spectral_mix_kernel(%arg0: i32, %arg1: memref<4x256xf32, #tpu.memory_space<vmem>>, %arg2: memref<4x256xf32, #tpu.memory_space<vmem>>, %arg3: memref<4x4x256xf32, #tpu.memory_space<vmem>>, %arg4: memref<4x4x256xf32, #tpu.memory_space<vmem>>, %arg5: memref<4x256xf32, #tpu.memory_space<vmem>>) attributes {dimension_semantics = [#tpu.dimension_semantics<arbitrary>], iteration_bounds = array<i64: 1>, scalar_prefetch = 0 : i64, scratch_operands = 0 : i64, tpu.core_type = #tpu.core_type<tc>, window_params = [{pipeline_mode = #tpu.pipeline_mode<synchronous>, transform_indices = @transform_0, window_bounds = array<i64: 4, 256>}, {pipeline_mode = #tpu.pipeline_mode<synchronous>, transform_indices = @transform_1, window_bounds = array<i64: 4, 256>}, {pipeline_mode = #tpu.pipeline_mode<synchronous>, transform_indices = @transform_2, window_bounds = array<i64: 4, 4, 256>}, {pipeline_mode = #tpu.pipeline_mode<synchronous>, transform_indices = @transform_3, window_bounds = array<i64: 4, 4, 256>}, {pipeline_mode = #tpu.pipeline_mode<synchronous>, transform_indices = @transform_4, window_bounds = array<i64: 4, 256>}]} {
    %c0 = arith.constant 0 : index
    %c0_0 = arith.constant 0 : index
    %0 = vector.load %arg1[%c0, %c0_0] : memref<4x256xf32, #tpu.memory_space<vmem>>, vector<4x256xf32>
    %c0_1 = arith.constant 0 : index
    %c0_2 = arith.constant 0 : index
    %1 = vector.load %arg2[%c0_1, %c0_2] : memref<4x256xf32, #tpu.memory_space<vmem>>, vector<4x256xf32>
    %c0_3 = arith.constant 0 : index
    %c0_4 = arith.constant 0 : index
    %c0_5 = arith.constant 0 : index
    %2 = vector.load %arg3[%c0_3, %c0_4, %c0_5] : memref<4x4x256xf32, #tpu.memory_space<vmem>>, vector<4x4x256xf32>
    %c0_6 = arith.constant 0 : index
    %c0_7 = arith.constant 0 : index
    %c0_8 = arith.constant 0 : index
    %3 = vector.load %arg4[%c0_6, %c0_7, %c0_8] : memref<4x4x256xf32, #tpu.memory_space<vmem>>, vector<4x4x256xf32>
    %cst = arith.constant 0.000000e+00 : f32
    %4 = vector.broadcast %cst : f32 to vector<4x256xf32>
    %5 = vector.extract_strided_slice %0 {offsets = [0, 0], sizes = [1, 256], strides = [1, 1]} : vector<4x256xf32> to vector<1x256xf32>
    %6 = vector.extract_strided_slice %2 {offsets = [0, 0, 0], sizes = [1, 4, 256], strides = [1, 1, 1]} : vector<4x4x256xf32> to vector<1x4x256xf32>
    %7 = vector.shape_cast %6 : vector<1x4x256xf32> to vector<4x256xf32>
    %8 = vector.broadcast %5 : vector<1x256xf32> to vector<4x256xf32>
    %9 = arith.mulf %8, %7 : vector<4x256xf32>
    %10 = arith.addf %4, %9 : vector<4x256xf32>
    %11 = vector.extract_strided_slice %1 {offsets = [0, 0], sizes = [1, 256], strides = [1, 1]} : vector<4x256xf32> to vector<1x256xf32>
    %12 = vector.extract_strided_slice %3 {offsets = [0, 0, 0], sizes = [1, 4, 256], strides = [1, 1, 1]} : vector<4x4x256xf32> to vector<1x4x256xf32>
    %13 = vector.shape_cast %12 : vector<1x4x256xf32> to vector<4x256xf32>
    %14 = vector.broadcast %11 : vector<1x256xf32> to vector<4x256xf32>
    %15 = arith.mulf %14, %13 : vector<4x256xf32>
    %16 = arith.addf %10, %15 : vector<4x256xf32>
    %17 = vector.extract_strided_slice %0 {offsets = [1, 0], sizes = [1, 256], strides = [1, 1]} : vector<4x256xf32> to vector<1x256xf32>
    %18 = vector.extract_strided_slice %2 {offsets = [1, 0, 0], sizes = [1, 4, 256], strides = [1, 1, 1]} : vector<4x4x256xf32> to vector<1x4x256xf32>
    %19 = vector.shape_cast %18 : vector<1x4x256xf32> to vector<4x256xf32>
    %20 = vector.broadcast %17 : vector<1x256xf32> to vector<4x256xf32>
    %21 = arith.mulf %20, %19 : vector<4x256xf32>
    %22 = arith.addf %16, %21 : vector<4x256xf32>
    %23 = vector.extract_strided_slice %1 {offsets = [1, 0], sizes = [1, 256], strides = [1, 1]} : vector<4x256xf32> to vector<1x256xf32>
    %24 = vector.extract_strided_slice %3 {offsets = [1, 0, 0], sizes = [1, 4, 256], strides = [1, 1, 1]} : vector<4x4x256xf32> to vector<1x4x256xf32>
    %25 = vector.shape_cast %24 : vector<1x4x256xf32> to vector<4x256xf32>
    %26 = vector.broadcast %23 : vector<1x256xf32> to vector<4x256xf32>
    %27 = arith.mulf %26, %25 : vector<4x256xf32>
    %28 = arith.addf %22, %27 : vector<4x256xf32>
    %29 = vector.extract_strided_slice %0 {offsets = [2, 0], sizes = [1, 256], strides = [1, 1]} : vector<4x256xf32> to vector<1x256xf32>
    %30 = vector.extract_strided_slice %2 {offsets = [2, 0, 0], sizes = [1, 4, 256], strides = [1, 1, 1]} : vector<4x4x256xf32> to vector<1x4x256xf32>
    %31 = vector.shape_cast %30 : vector<1x4x256xf32> to vector<4x256xf32>
    %32 = vector.broadcast %29 : vector<1x256xf32> to vector<4x256xf32>
    %33 = arith.mulf %32, %31 : vector<4x256xf32>
    %34 = arith.addf %28, %33 : vector<4x256xf32>
    %35 = vector.extract_strided_slice %1 {offsets = [2, 0], sizes = [1, 256], strides = [1, 1]} : vector<4x256xf32> to vector<1x256xf32>
    %36 = vector.extract_strided_slice %3 {offsets = [2, 0, 0], sizes = [1, 4, 256], strides = [1, 1, 1]} : vector<4x4x256xf32> to vector<1x4x256xf32>
    %37 = vector.shape_cast %36 : vector<1x4x256xf32> to vector<4x256xf32>
    %38 = vector.broadcast %35 : vector<1x256xf32> to vector<4x256xf32>
    %39 = arith.mulf %38, %37 : vector<4x256xf32>
    %40 = arith.addf %34, %39 : vector<4x256xf32>
    %41 = vector.extract_strided_slice %0 {offsets = [3, 0], sizes = [1, 256], strides = [1, 1]} : vector<4x256xf32> to vector<1x256xf32>
    %42 = vector.extract_strided_slice %2 {offsets = [3, 0, 0], sizes = [1, 4, 256], strides = [1, 1, 1]} : vector<4x4x256xf32> to vector<1x4x256xf32>
    %43 = vector.shape_cast %42 : vector<1x4x256xf32> to vector<4x256xf32>
    %44 = vector.broadcast %41 : vector<1x256xf32> to vector<4x256xf32>
    %45 = arith.mulf %44, %43 : vector<4x256xf32>
    %46 = arith.addf %40, %45 : vector<4x256xf32>
    %47 = vector.extract_strided_slice %1 {offsets = [3, 0], sizes = [1, 256], strides = [1, 1]} : vector<4x256xf32> to vector<1x256xf32>
    %48 = vector.extract_strided_slice %3 {offsets = [3, 0, 0], sizes = [1, 4, 256], strides = [1, 1, 1]} : vector<4x4x256xf32> to vector<1x4x256xf32>
    %49 = vector.shape_cast %48 : vector<1x4x256xf32> to vector<4x256xf32>
    %50 = vector.broadcast %47 : vector<1x256xf32> to vector<4x256xf32>
    %51 = arith.mulf %50, %49 : vector<4x256xf32>
    %52 = arith.addf %46, %51 : vector<4x256xf32>
    %c0_9 = arith.constant 0 : index
    %c0_10 = arith.constant 0 : index
    %53 = vector.load %arg5[%c0_9, %c0_10] : memref<4x256xf32, #tpu.memory_space<vmem>>, vector<4x256xf32>
    tpu.vector_store %arg5[%c0_9, %c0_10], %52 {strides = array<i32>} : memref<4x256xf32, #tpu.memory_space<vmem>>, vector<4x256xf32>,
    return
  }
  func.func @transform_0(%arg0: i32) -> (i32, i32) {
    %c0_i32 = arith.constant 0 : i32
    %c0_i32_0 = arith.constant 0 : i32
    %c0_i32_1 = arith.constant 0 : i32
    return %c0_i32, %c0_i32_0 : i32, i32
  }
  func.func @transform_1(%arg0: i32) -> (i32, i32) {
    %c0_i32 = arith.constant 0 : i32
    %c0_i32_0 = arith.constant 0 : i32
    %c0_i32_1 = arith.constant 0 : i32
    return %c0_i32, %c0_i32_0 : i32, i32
  }
  func.func @transform_2(%arg0: i32) -> (i32, i32, i32) {
    %c0_i32 = arith.constant 0 : i32
    %c0_i32_0 = arith.constant 0 : i32
    %c0_i32_1 = arith.constant 0 : i32
    %c0_i32_2 = arith.constant 0 : i32
    return %c0_i32, %c0_i32_0, %c0_i32_1 : i32, i32, i32
  }
  func.func @transform_3(%arg0: i32) -> (i32, i32, i32) {
    %c0_i32 = arith.constant 0 : i32
    %c0_i32_0 = arith.constant 0 : i32
    %c0_i32_1 = arith.constant 0 : i32
    %c0_i32_2 = arith.constant 0 : i32
    return %c0_i32, %c0_i32_0, %c0_i32_1 : i32, i32, i32
  }
  func.func @transform_4(%arg0: i32) -> (i32, i32) {
    %c0_i32 = arith.constant 0 : i32
    %c0_i32_0 = arith.constant 0 : i32
    %c0_i32_1 = arith.constant 0 : i32
    return %c0_i32, %c0_i32_0 : i32, i32
  }
}

module attributes {stable_mosaic.version = 11 : i64} {
  func.func @_spde_rhs_kernel(%arg0: i32, %arg1: memref<4x256xf32, #tpu.memory_space<vmem>>, %arg2: memref<3x256xf32, #tpu.memory_space<vmem>>, %arg3: memref<16x4xf32, #tpu.memory_space<vmem>>, %arg4: memref<16x1xf32, #tpu.memory_space<vmem>>, %arg5: memref<4x256xf32, #tpu.memory_space<vmem>>) attributes {dimension_semantics = [#tpu.dimension_semantics<arbitrary>], iteration_bounds = array<i64: 1>, scalar_prefetch = 0 : i64, scratch_operands = 0 : i64, tpu.core_type = #tpu.core_type<tc>, window_params = [{pipeline_mode = #tpu.pipeline_mode<synchronous>, transform_indices = @transform_0, window_bounds = array<i64: 4, 256>}, {pipeline_mode = #tpu.pipeline_mode<synchronous>, transform_indices = @transform_1, window_bounds = array<i64: 3, 256>}, {pipeline_mode = #tpu.pipeline_mode<synchronous>, transform_indices = @transform_2, window_bounds = array<i64: 16, 4>}, {pipeline_mode = #tpu.pipeline_mode<synchronous>, transform_indices = @transform_3, window_bounds = array<i64: 16, 1>}, {pipeline_mode = #tpu.pipeline_mode<synchronous>, transform_indices = @transform_4, window_bounds = array<i64: 4, 256>}]} {
    %c0 = arith.constant 0 : index
    %c0_0 = arith.constant 0 : index
    %0 = vector.load %arg3[%c0, %c0_0] : memref<16x4xf32, #tpu.memory_space<vmem>>, vector<16x4xf32>
    %c0_1 = arith.constant 0 : index
    %c0_2 = arith.constant 0 : index
    %1 = vector.load %arg1[%c0_1, %c0_2] : memref<4x256xf32, #tpu.memory_space<vmem>>, vector<4x256xf32>
    %cst = arith.constant dense<0.000000e+00> : vector<16x256xf32>
    %2 = tpu.matmul %0, %1, %cst {dimension_numbers = #tpu.dot_dimension_numbers<[1], [0], [0], [1], [0, 0, 1, 1], [], []>} : vector<16x4xf32>, vector<4x256xf32>, vector<16x256xf32> -> vector<16x256xf32>
    %c0_3 = arith.constant 0 : index
    %c0_4 = arith.constant 0 : index
    %3 = vector.load %arg4[%c0_3, %c0_4] : memref<16x1xf32, #tpu.memory_space<vmem>>, vector<16x1xf32>
    %4 = vector.broadcast %3 : vector<16x1xf32> to vector<16x256xf32>
    %5 = arith.addf %2, %4 : vector<16x256xf32>
    %6 = math.tanh %5 : vector<16x256xf32>
    %7 = vector.extract_strided_slice %6 {offsets = [0, 0], sizes = [4, 256], strides = [1, 1]} : vector<16x256xf32> to vector<4x256xf32>
    %c0_5 = arith.constant 0 : index
    %c0_6 = arith.constant 0 : index
    %8 = vector.load %arg2[%c0_5, %c0_6] : memref<3x256xf32, #tpu.memory_space<vmem>>, vector<3x256xf32>
    %9 = vector.extract_strided_slice %6 {offsets = [4, 0], sizes = [4, 256], strides = [1, 1]} : vector<16x256xf32> to vector<4x256xf32>
    %10 = vector.extract_strided_slice %8 {offsets = [0, 0], sizes = [1, 256], strides = [1, 1]} : vector<3x256xf32> to vector<1x256xf32>
    %11 = vector.broadcast %10 : vector<1x256xf32> to vector<4x256xf32>
    %12 = arith.mulf %9, %11 : vector<4x256xf32>
    %13 = arith.addf %7, %12 : vector<4x256xf32>
    %14 = vector.extract_strided_slice %6 {offsets = [8, 0], sizes = [4, 256], strides = [1, 1]} : vector<16x256xf32> to vector<4x256xf32>
    %15 = vector.extract_strided_slice %8 {offsets = [1, 0], sizes = [1, 256], strides = [1, 1]} : vector<3x256xf32> to vector<1x256xf32>
    %16 = vector.broadcast %15 : vector<1x256xf32> to vector<4x256xf32>
    %17 = arith.mulf %14, %16 : vector<4x256xf32>
    %18 = arith.addf %13, %17 : vector<4x256xf32>
    %19 = vector.extract_strided_slice %6 {offsets = [12, 0], sizes = [4, 256], strides = [1, 1]} : vector<16x256xf32> to vector<4x256xf32>
    %20 = vector.extract_strided_slice %8 {offsets = [2, 0], sizes = [1, 256], strides = [1, 1]} : vector<3x256xf32> to vector<1x256xf32>
    %21 = vector.broadcast %20 : vector<1x256xf32> to vector<4x256xf32>
    %22 = arith.mulf %19, %21 : vector<4x256xf32>
    %23 = arith.addf %18, %22 : vector<4x256xf32>
    %c0_7 = arith.constant 0 : index
    %c0_8 = arith.constant 0 : index
    %24 = vector.load %arg5[%c0_7, %c0_8] : memref<4x256xf32, #tpu.memory_space<vmem>>, vector<4x256xf32>
    tpu.vector_store %arg5[%c0_7, %c0_8], %23 {strides = array<i32>} : memref<4x256xf32, #tpu.memory_space<vmem>>, vector<4x256xf32>,
    return
  }
  func.func @transform_0(%arg0: i32) -> (i32, i32) {
    %c0_i32 = arith.constant 0 : i32
    %c0_i32_0 = arith.constant 0 : i32
    %c0_i32_1 = arith.constant 0 : i32
    return %c0_i32, %c0_i32_0 : i32, i32
  }
  func.func @transform_1(%arg0: i32) -> (i32, i32) {
    %c0_i32 = arith.constant 0 : i32
    %c0_i32_0 = arith.constant 0 : i32
    %c0_i32_1 = arith.constant 0 : i32
    return %c0_i32, %c0_i32_0 : i32, i32
  }
  func.func @transform_2(%arg0: i32) -> (i32, i32) {
    %c0_i32 = arith.constant 0 : i32
    %c0_i32_0 = arith.constant 0 : i32
    %c0_i32_1 = arith.constant 0 : i32
    return %c0_i32, %c0_i32_0 : i32, i32
  }
  func.func @transform_3(%arg0: i32) -> (i32, i32) {
    %c0_i32 = arith.constant 0 : i32
    %c0_i32_0 = arith.constant 0 : i32
    %c0_i32_1 = arith.constant 0 : i32
    return %c0_i32, %c0_i32_0 : i32, i32
  }
  func.func @transform_4(%arg0: i32) -> (i32, i32) {
    %c0_i32 = arith.constant 0 : i32
    %c0_i32_0 = arith.constant 0 : i32
    %c0_i32_1 = arith.constant 0 : i32
    return %c0_i32, %c0_i32_0 : i32, i32
  }
}

module attributes {stable_mosaic.version = 11 : i64} {
  func.func @_spectral_mix_kernel(%arg0: i32, %arg1: memref<4x128xf32, #tpu.memory_space<vmem>>, %arg2: memref<4x128xf32, #tpu.memory_space<vmem>>, %arg3: memref<4x4x128xf32, #tpu.memory_space<vmem>>, %arg4: memref<4x4x128xf32, #tpu.memory_space<vmem>>, %arg5: memref<4x128xf32, #tpu.memory_space<vmem>>) attributes {dimension_semantics = [#tpu.dimension_semantics<arbitrary>], iteration_bounds = array<i64: 1>, scalar_prefetch = 0 : i64, scratch_operands = 0 : i64, tpu.core_type = #tpu.core_type<tc>, window_params = [{pipeline_mode = #tpu.pipeline_mode<synchronous>, transform_indices = @transform_0, window_bounds = array<i64: 4, 128>}, {pipeline_mode = #tpu.pipeline_mode<synchronous>, transform_indices = @transform_1, window_bounds = array<i64: 4, 128>}, {pipeline_mode = #tpu.pipeline_mode<synchronous>, transform_indices = @transform_2, window_bounds = array<i64: 4, 4, 128>}, {pipeline_mode = #tpu.pipeline_mode<synchronous>, transform_indices = @transform_3, window_bounds = array<i64: 4, 4, 128>}, {pipeline_mode = #tpu.pipeline_mode<synchronous>, transform_indices = @transform_4, window_bounds = array<i64: 4, 128>}]} {
    %c0 = arith.constant 0 : index
    %c0_0 = arith.constant 0 : index
    %0 = vector.load %arg1[%c0, %c0_0] : memref<4x128xf32, #tpu.memory_space<vmem>>, vector<4x128xf32>
    %c0_1 = arith.constant 0 : index
    %c0_2 = arith.constant 0 : index
    %1 = vector.load %arg2[%c0_1, %c0_2] : memref<4x128xf32, #tpu.memory_space<vmem>>, vector<4x128xf32>
    %c0_3 = arith.constant 0 : index
    %c0_4 = arith.constant 0 : index
    %c0_5 = arith.constant 0 : index
    %2 = vector.load %arg3[%c0_3, %c0_4, %c0_5] : memref<4x4x128xf32, #tpu.memory_space<vmem>>, vector<4x4x128xf32>
    %c0_6 = arith.constant 0 : index
    %c0_7 = arith.constant 0 : index
    %c0_8 = arith.constant 0 : index
    %3 = vector.load %arg4[%c0_6, %c0_7, %c0_8] : memref<4x4x128xf32, #tpu.memory_space<vmem>>, vector<4x4x128xf32>
    %cst = arith.constant 0.000000e+00 : f32
    %4 = vector.broadcast %cst : f32 to vector<4x128xf32>
    %5 = vector.extract_strided_slice %0 {offsets = [0, 0], sizes = [1, 128], strides = [1, 1]} : vector<4x128xf32> to vector<1x128xf32>
    %6 = vector.extract_strided_slice %2 {offsets = [0, 0, 0], sizes = [1, 4, 128], strides = [1, 1, 1]} : vector<4x4x128xf32> to vector<1x4x128xf32>
    %7 = vector.shape_cast %6 : vector<1x4x128xf32> to vector<4x128xf32>
    %8 = vector.broadcast %5 : vector<1x128xf32> to vector<4x128xf32>
    %9 = arith.mulf %8, %7 : vector<4x128xf32>
    %10 = arith.addf %4, %9 : vector<4x128xf32>
    %11 = vector.extract_strided_slice %1 {offsets = [0, 0], sizes = [1, 128], strides = [1, 1]} : vector<4x128xf32> to vector<1x128xf32>
    %12 = vector.extract_strided_slice %3 {offsets = [0, 0, 0], sizes = [1, 4, 128], strides = [1, 1, 1]} : vector<4x4x128xf32> to vector<1x4x128xf32>
    %13 = vector.shape_cast %12 : vector<1x4x128xf32> to vector<4x128xf32>
    %14 = vector.broadcast %11 : vector<1x128xf32> to vector<4x128xf32>
    %15 = arith.mulf %14, %13 : vector<4x128xf32>
    %16 = arith.addf %10, %15 : vector<4x128xf32>
    %17 = vector.extract_strided_slice %0 {offsets = [1, 0], sizes = [1, 128], strides = [1, 1]} : vector<4x128xf32> to vector<1x128xf32>
    %18 = vector.extract_strided_slice %2 {offsets = [1, 0, 0], sizes = [1, 4, 128], strides = [1, 1, 1]} : vector<4x4x128xf32> to vector<1x4x128xf32>
    %19 = vector.shape_cast %18 : vector<1x4x128xf32> to vector<4x128xf32>
    %20 = vector.broadcast %17 : vector<1x128xf32> to vector<4x128xf32>
    %21 = arith.mulf %20, %19 : vector<4x128xf32>
    %22 = arith.addf %16, %21 : vector<4x128xf32>
    %23 = vector.extract_strided_slice %1 {offsets = [1, 0], sizes = [1, 128], strides = [1, 1]} : vector<4x128xf32> to vector<1x128xf32>
    %24 = vector.extract_strided_slice %3 {offsets = [1, 0, 0], sizes = [1, 4, 128], strides = [1, 1, 1]} : vector<4x4x128xf32> to vector<1x4x128xf32>
    %25 = vector.shape_cast %24 : vector<1x4x128xf32> to vector<4x128xf32>
    %26 = vector.broadcast %23 : vector<1x128xf32> to vector<4x128xf32>
    %27 = arith.mulf %26, %25 : vector<4x128xf32>
    %28 = arith.addf %22, %27 : vector<4x128xf32>
    %29 = vector.extract_strided_slice %0 {offsets = [2, 0], sizes = [1, 128], strides = [1, 1]} : vector<4x128xf32> to vector<1x128xf32>
    %30 = vector.extract_strided_slice %2 {offsets = [2, 0, 0], sizes = [1, 4, 128], strides = [1, 1, 1]} : vector<4x4x128xf32> to vector<1x4x128xf32>
    %31 = vector.shape_cast %30 : vector<1x4x128xf32> to vector<4x128xf32>
    %32 = vector.broadcast %29 : vector<1x128xf32> to vector<4x128xf32>
    %33 = arith.mulf %32, %31 : vector<4x128xf32>
    %34 = arith.addf %28, %33 : vector<4x128xf32>
    %35 = vector.extract_strided_slice %1 {offsets = [2, 0], sizes = [1, 128], strides = [1, 1]} : vector<4x128xf32> to vector<1x128xf32>
    %36 = vector.extract_strided_slice %3 {offsets = [2, 0, 0], sizes = [1, 4, 128], strides = [1, 1, 1]} : vector<4x4x128xf32> to vector<1x4x128xf32>
    %37 = vector.shape_cast %36 : vector<1x4x128xf32> to vector<4x128xf32>
    %38 = vector.broadcast %35 : vector<1x128xf32> to vector<4x128xf32>
    %39 = arith.mulf %38, %37 : vector<4x128xf32>
    %40 = arith.addf %34, %39 : vector<4x128xf32>
    %41 = vector.extract_strided_slice %0 {offsets = [3, 0], sizes = [1, 128], strides = [1, 1]} : vector<4x128xf32> to vector<1x128xf32>
    %42 = vector.extract_strided_slice %2 {offsets = [3, 0, 0], sizes = [1, 4, 128], strides = [1, 1, 1]} : vector<4x4x128xf32> to vector<1x4x128xf32>
    %43 = vector.shape_cast %42 : vector<1x4x128xf32> to vector<4x128xf32>
    %44 = vector.broadcast %41 : vector<1x128xf32> to vector<4x128xf32>
    %45 = arith.mulf %44, %43 : vector<4x128xf32>
    %46 = arith.addf %40, %45 : vector<4x128xf32>
    %47 = vector.extract_strided_slice %1 {offsets = [3, 0], sizes = [1, 128], strides = [1, 1]} : vector<4x128xf32> to vector<1x128xf32>
    %48 = vector.extract_strided_slice %3 {offsets = [3, 0, 0], sizes = [1, 4, 128], strides = [1, 1, 1]} : vector<4x4x128xf32> to vector<1x4x128xf32>
    %49 = vector.shape_cast %48 : vector<1x4x128xf32> to vector<4x128xf32>
    %50 = vector.broadcast %47 : vector<1x128xf32> to vector<4x128xf32>
    %51 = arith.mulf %50, %49 : vector<4x128xf32>
    %52 = arith.addf %46, %51 : vector<4x128xf32>
    %c0_9 = arith.constant 0 : index
    %c0_10 = arith.constant 0 : index
    %53 = vector.load %arg5[%c0_9, %c0_10] : memref<4x128xf32, #tpu.memory_space<vmem>>, vector<4x128xf32>
    tpu.vector_store %arg5[%c0_9, %c0_10], %52 {strides = array<i32>} : memref<4x128xf32, #tpu.memory_space<vmem>>, vector<4x128xf32>,
    return
  }
  func.func @transform_0(%arg0: i32) -> (i32, i32) {
    %c0_i32 = arith.constant 0 : i32
    %c0_i32_0 = arith.constant 0 : i32
    %c0_i32_1 = arith.constant 0 : i32
    return %c0_i32, %c0_i32_0 : i32, i32
  }
  func.func @transform_1(%arg0: i32) -> (i32, i32) {
    %c0_i32 = arith.constant 0 : i32
    %c0_i32_0 = arith.constant 0 : i32
    %c0_i32_1 = arith.constant 0 : i32
    return %c0_i32, %c0_i32_0 : i32, i32
  }
  func.func @transform_2(%arg0: i32) -> (i32, i32, i32) {
    %c0_i32 = arith.constant 0 : i32
    %c0_i32_0 = arith.constant 0 : i32
    %c0_i32_1 = arith.constant 0 : i32
    %c0_i32_2 = arith.constant 0 : i32
    return %c0_i32, %c0_i32_0, %c0_i32_1 : i32, i32, i32
  }
  func.func @transform_3(%arg0: i32) -> (i32, i32, i32) {
    %c0_i32 = arith.constant 0 : i32
    %c0_i32_0 = arith.constant 0 : i32
    %c0_i32_1 = arith.constant 0 : i32
    %c0_i32_2 = arith.constant 0 : i32
    return %c0_i32, %c0_i32_0, %c0_i32_1 : i32, i32, i32
  }
  func.func @transform_4(%arg0: i32) -> (i32, i32) {
    %c0_i32 = arith.constant 0 : i32
    %c0_i32_0 = arith.constant 0 : i32
    %c0_i32_1 = arith.constant 0 : i32
    return %c0_i32, %c0_i32_0 : i32, i32
  }
}

</mosaic_0001>

<llo_original>
// kernel: neg.2
$region0: #{neg.2}
  #allocation0 [shape = 's32[1]{0}', space=sflag, size = 0x4, scoped, tag = 'scoped memory for neg.2']
  %s0 = inlined_call_operand.vmem [shape: f32[4,4,64], index: 0, kind: input, shape index: {}]
  %s1 = inlined_call_operand.vmem [shape: f32[4,4,64], index: 1, kind: output, shape index: {}]
  %v2 = vld [vmem:[%s0] sm:$0xf]
  %3 = xla_tuple %v2
  %4 = xla_tuple %3
  %v5 = vxor.u32 %v2, 2147483648
  %6 = xla_tuple %v5
  %7 = vst [vmem:[%s1] sm:$0xf] %v5
  %s8 = scalar_lea.vmem %s0, 4
  %v9 = vld [vmem:[%s8] sm:$0xf]
  %10 = xla_tuple %v9
  %11 = xla_tuple %10
  %v12 = vxor.u32 %v9, 2147483648
  %13 = xla_tuple %v12
  %s14 = scalar_lea.vmem %s1, 4
  %15 = vst [vmem:[%s14] sm:$0xf] %v12
  %s16 = scalar_lea.vmem %s0, 8
  %v17 = vld [vmem:[%s16] sm:$0xf]
  %18 = xla_tuple %v17
  %19 = xla_tuple %18
  %v20 = vxor.u32 %v17, 2147483648
  %21 = xla_tuple %v20
  %s22 = scalar_lea.vmem %s1, 8
  %23 = vst [vmem:[%s22] sm:$0xf] %v20
  %s24 = scalar_lea.vmem %s0, 12
  %v25 = vld [vmem:[%s24] sm:$0xf]
  %26 = xla_tuple %v25
  %27 = xla_tuple %26
  %v28 = vxor.u32 %v25, 2147483648
  %29 = xla_tuple %v28
  %s30 = scalar_lea.vmem %s1, 12
  %31 = vst [vmem:[%s30] sm:$0xf] %v28

// kernel: tile.19
$region0: #{tile.19}
  %s0 = inlined_call_operand.vmem [shape: f32[4,4,2,32], index: 0, kind: input, shape index: {}]
  %s1 = inlined_call_operand.vmem [shape: f32[4,4,64], index: 1, kind: output, shape index: {}]
  $region1: #{tile.19} parent=0
    #allocation0 [shape = 'u8[16384]{0}', space=vmem, size = 0x4000, scoped, tag = 'scoped mem for output reshape']
    #allocation1 [shape = 'u8[65536]{0}', space=vmem, size = 0x10000, scoped, tag = 'scoped mem for input reshape']
    %s3 = sshll.u32 1, 2
    %s4 = ssub.s32 %s3, 1
    %s5 = smul.addr 2, 15
    %s6 = scalar_lea.vmem %s0, %s5
    %v7 = vld [vmem:[%s6] sm:%s4]
    %s8 = scalar_lea.vmem [#allocation1], 120
    %9 = vst [vmem:[%s8] sm:%s4] %v7
    %s10 = smul.addr 2, 14
    %s11 = scalar_lea.vmem %s0, %s10
    %v12 = vld [vmem:[%s11] sm:%s4]
    %s13 = scalar_lea.vmem [#allocation1], 112
    %14 = vst [vmem:[%s13] sm:%s4] %v12
    %s15 = smul.addr 2, 13
    %s16 = scalar_lea.vmem %s0, %s15
    %v17 = vld [vmem:[%s16] sm:%s4]
    %s18 = scalar_lea.vmem [#allocation1], 104
    %19 = vst [vmem:[%s18] sm:%s4] %v17
    %s20 = smul.addr 2, 12
    %s21 = scalar_lea.vmem %s0, %s20
    %v22 = vld [vmem:[%s21] sm:%s4]
    %s23 = scalar_lea.vmem [#allocation1], 96
    %24 = vst [vmem:[%s23] sm:%s4] %v22
    %s25 = smul.addr 2, 11
    %s26 = scalar_lea.vmem %s0, %s25
    %v27 = vld [vmem:[%s26] sm:%s4]
    %s28 = scalar_lea.vmem [#allocation1], 88
    %29 = vst [vmem:[%s28] sm:%s4] %v27
    %s30 = smul.addr 2, 10
    %s31 = scalar_lea.vmem %s0, %s30
    %v32 = vld [vmem:[%s31] sm:%s4]
    %s33 = scalar_lea.vmem [#allocation1], 80
    %34 = vst [vmem:[%s33] sm:%s4] %v32
    %s35 = smul.addr 2, 9
    %s36 = scalar_lea.vmem %s0, %s35
    %v37 = vld [vmem:[%s36] sm:%s4]
    %s38 = scalar_lea.vmem [#allocation1], 72
    %39 = vst [vmem:[%s38] sm:%s4] %v37
    %s40 = smul.addr 2, 8
    %s41 = scalar_lea.vmem %s0, %s40
    %v42 = vld [vmem:[%s41] sm:%s4]
    %s43 = scalar_lea.vmem [#allocation1], 64
    %44 = vst [vmem:[%s43] sm:%s4] %v42
    %s45 = smul.addr 2, 7
    %s46 = scalar_lea.vmem %s0, %s45
    %v47 = vld [vmem:[%s46] sm:%s4]
    %s48 = scalar_lea.vmem [#allocation1], 56
    %49 = vst [vmem:[%s48] sm:%s4] %v47
    %s50 = smul.addr 2, 6
    %s51 = scalar_lea.vmem %s0, %s50
    %v52 = vld [vmem:[%s51] sm:%s4]
    %s53 = scalar_lea.vmem [#allocation1], 48
    %54 = vst [vmem:[%s53] sm:%s4] %v52
    %s55 = smul.addr 2, 5
    %s56 = scalar_lea.vmem %s0, %s55
    %v57 = vld [vmem:[%s56] sm:%s4]
    %s58 = scalar_lea.vmem [#allocation1], 40
    %59 = vst [vmem:[%s58] sm:%s4] %v57
    %s60 = smul.addr 2, 4
    %s61 = scalar_lea.vmem %s0, %s60
    %v62 = vld [vmem:[%s61] sm:%s4]
    %s63 = scalar_lea.vmem [#allocation1], 32
    %64 = vst [vmem:[%s63] sm:%s4] %v62
    %s65 = smul.addr 2, 3
    %s66 = scalar_lea.vmem %s0, %s65
    %v67 = vld [vmem:[%s66] sm:%s4]
    %s68 = scalar_lea.vmem [#allocation1], 24
    %69 = vst [vmem:[%s68] sm:%s4] %v67
    %s70 = smul.addr 2, 2
    %s71 = scalar_lea.vmem %s0, %s70
    %v72 = vld [vmem:[%s71] sm:%s4]
    %s73 = scalar_lea.vmem [#allocation1], 16
    %74 = vst [vmem:[%s73] sm:%s4] %v72
    %s75 = scalar_lea.vmem %s0, 2
    %v76 = vld [vmem:[%s75] sm:%s4]
    %s77 = scalar_lea.vmem [#allocation1], 8
    %78 = vst [vmem:[%s77] sm:%s4] %v76
    %v79 = vld [vmem:[%s0] sm:%s4]
    %80 = vst [vmem:[#allocation1] sm:%s4] %v79
    %v81 = vld [vmem:[#allocation1] ss:$8 sm:$0xf]
    %v82 = vld [vmem:[#allocation1] ss:$8 sm:$0xf0]
    %vm83 = vcmask 1047556
    %v84 = vsel %vm83, %v82, %v81
    %vm85 = vcmask 261120
    %86 = vst.msk [vmem:[#allocation0] sm:$0xf] %vm85, %v84
    %s87 = scalar_lea.vmem [#allocation0], 4
    %88 = vst.msk [vmem:[%s87] sm:$0xf0] %vm85, %v84
    %s89 = scalar_lea.vmem [#allocation1], 64
    %v90 = vld [vmem:[%s89] ss:$8 sm:$0xf]
    %s91 = scalar_lea.vmem [#allocation1], 64
    %v92 = vld [vmem:[%s91] ss:$8 sm:$0xf0]
    %vm93 = vcmask 1047556
    %v94 = vsel %vm93, %v92, %v90
    %vm95 = vcmask 261120
    %s96 = scalar_lea.vmem [#allocation0], 16
    %97 = vst.msk [vmem:[%s96] sm:$0xf] %vm95, %v94
    %s98 = scalar_lea.vmem [#allocation0], 20
    %99 = vst.msk [vmem:[%s98] sm:$0xf0] %vm95, %v94
    %s100 = scalar_lea.vmem [#allocation1], 1
    %v101 = vld [vmem:[%s100] ss:$8 sm:$0xf]
    %s102 = scalar_lea.vmem [#allocation1], 1
    %v103 = vld [vmem:[%s102] ss:$8 sm:$0xf0]
    %vm104 = vcmask 1047556
    %v105 = vsel %vm104, %v103, %v101
    %106 = vrot.lane.b32.xlu0 %v105, 32
    %v107 = vpop.permute.xlu0 %106
    %vm108 = vcmask 523520
    %109 = vst.msk [vmem:[#allocation0] sm:$0xf] %vm108, %v107
    %s110 = scalar_lea.vmem [#allocation0], 4
    %111 = vst.msk [vmem:[%s110] sm:$0xf0] %vm108, %v107
    %s112 = scalar_lea.vmem [#allocation1], 65
    %v113 = vld [vmem:[%s112] ss:$8 sm:$0xf]
    %s114 = scalar_lea.vmem [#allocation1], 65
    %v115 = vld [vmem:[%s114] ss:$8 sm:$0xf0]
    %vm116 = vcmask 1047556
    %v117 = vsel %vm116, %v115, %v113
    %118 = vrot.lane.b32.xlu0 %v117, 32
    %v119 = vpop.permute.xlu0 %118
    %vm120 = vcmask 523520
    %s121 = scalar_lea.vmem [#allocation0], 16
    %122 = vst.msk [vmem:[%s121] sm:$0xf] %vm120, %v119
    %s123 = scalar_lea.vmem [#allocation0], 20
    %124 = vst.msk [vmem:[%s123] sm:$0xf0] %vm120, %v119
    %s126 = sshll.u32 1, 4
    %s127 = ssub.s32 %s126, 1
    %v129 = vld [vmem:[#allocation0] sm:%s127]
    %s130 = sshll.u32 1, 4
    %s131 = ssub.s32 %s130, 1
    %132 = vst [vmem:[%s1] sm:%s131] %v129
    %s133 = scalar_lea.vmem [#allocation0], 8
    %v134 = vld [vmem:[%s133] sm:%s127]
    %s135 = sshll.u32 1, 4
    %s136 = ssub.s32 %s135, 1
    %s137 = scalar_lea.vmem %s1, 4
    %138 = vst [vmem:[%s137] sm:%s136] %v134
    %s139 = scalar_lea.vmem [#allocation0], 16
    %v140 = vld [vmem:[%s139] sm:%s127]
    %s141 = sshll.u32 1, 4
    %s142 = ssub.s32 %s141, 1
    %s143 = smul.addr 4, 2
    %s144 = scalar_lea.vmem %s1, %s143
    %145 = vst [vmem:[%s144] sm:%s142] %v140
    %s146 = scalar_lea.vmem [#allocation0], 24
    %v147 = vld [vmem:[%s146] sm:%s127]
    %s148 = sshll.u32 1, 4
    %s149 = ssub.s32 %s148, 1
    %s150 = smul.addr 4, 3
    %s151 = scalar_lea.vmem %s1, %s150
    %152 = vst [vmem:[%s151] sm:%s149] %v147

// kernel: tile.27
$region0: #{tile.27}
  %s0 = inlined_call_operand.vmem [shape: f32[4,4,2,64], index: 0, kind: input, shape index: {}]
  %s1 = inlined_call_operand.vmem [shape: f32[4,4,128], index: 1, kind: output, shape index: {}]
  $region1: #{tile.27} parent=0
    #allocation0 [shape = 'u8[16384]{0}', space=vmem, size = 0x4000, scoped, tag = 'scoped mem for output reshape']
    #allocation1 [shape = 'u8[65536]{0}', space=vmem, size = 0x10000, scoped, tag = 'scoped mem for input reshape']
    %s3 = sshll.u32 1, 2
    %s4 = ssub.s32 %s3, 1
    %s5 = smul.addr 2, 15
    %s6 = scalar_lea.vmem %s0, %s5
    %v7 = vld [vmem:[%s6] sm:%s4]
    %s8 = scalar_lea.vmem [#allocation1], 120
    %9 = vst [vmem:[%s8] sm:%s4] %v7
    %s10 = smul.addr 2, 14
    %s11 = scalar_lea.vmem %s0, %s10
    %v12 = vld [vmem:[%s11] sm:%s4]
    %s13 = scalar_lea.vmem [#allocation1], 112
    %14 = vst [vmem:[%s13] sm:%s4] %v12
    %s15 = smul.addr 2, 13
    %s16 = scalar_lea.vmem %s0, %s15
    %v17 = vld [vmem:[%s16] sm:%s4]
    %s18 = scalar_lea.vmem [#allocation1], 104
    %19 = vst [vmem:[%s18] sm:%s4] %v17
    %s20 = smul.addr 2, 12
    %s21 = scalar_lea.vmem %s0, %s20
    %v22 = vld [vmem:[%s21] sm:%s4]
    %s23 = scalar_lea.vmem [#allocation1], 96
    %24 = vst [vmem:[%s23] sm:%s4] %v22
    %s25 = smul.addr 2, 11
    %s26 = scalar_lea.vmem %s0, %s25
    %v27 = vld [vmem:[%s26] sm:%s4]
    %s28 = scalar_lea.vmem [#allocation1], 88
    %29 = vst [vmem:[%s28] sm:%s4] %v27
    %s30 = smul.addr 2, 10
    %s31 = scalar_lea.vmem %s0, %s30
    %v32 = vld [vmem:[%s31] sm:%s4]
    %s33 = scalar_lea.vmem [#allocation1], 80
    %34 = vst [vmem:[%s33] sm:%s4] %v32
    %s35 = smul.addr 2, 9
    %s36 = scalar_lea.vmem %s0, %s35
    %v37 = vld [vmem:[%s36] sm:%s4]
    %s38 = scalar_lea.vmem [#allocation1], 72
    %39 = vst [vmem:[%s38] sm:%s4] %v37
    %s40 = smul.addr 2, 8
    %s41 = scalar_lea.vmem %s0, %s40
    %v42 = vld [vmem:[%s41] sm:%s4]
    %s43 = scalar_lea.vmem [#allocation1], 64
    %44 = vst [vmem:[%s43] sm:%s4] %v42
    %s45 = smul.addr 2, 7
    %s46 = scalar_lea.vmem %s0, %s45
    %v47 = vld [vmem:[%s46] sm:%s4]
    %s48 = scalar_lea.vmem [#allocation1], 56
    %49 = vst [vmem:[%s48] sm:%s4] %v47
    %s50 = smul.addr 2, 6
    %s51 = scalar_lea.vmem %s0, %s50
    %v52 = vld [vmem:[%s51] sm:%s4]
    %s53 = scalar_lea.vmem [#allocation1], 48
    %54 = vst [vmem:[%s53] sm:%s4] %v52
    %s55 = smul.addr 2, 5
    %s56 = scalar_lea.vmem %s0, %s55
    %v57 = vld [vmem:[%s56] sm:%s4]
    %s58 = scalar_lea.vmem [#allocation1], 40
    %59 = vst [vmem:[%s58] sm:%s4] %v57
    %s60 = smul.addr 2, 4
    %s61 = scalar_lea.vmem %s0, %s60
    %v62 = vld [vmem:[%s61] sm:%s4]
    %s63 = scalar_lea.vmem [#allocation1], 32
    %64 = vst [vmem:[%s63] sm:%s4] %v62
    %s65 = smul.addr 2, 3
    %s66 = scalar_lea.vmem %s0, %s65
    %v67 = vld [vmem:[%s66] sm:%s4]
    %s68 = scalar_lea.vmem [#allocation1], 24
    %69 = vst [vmem:[%s68] sm:%s4] %v67
    %s70 = smul.addr 2, 2
    %s71 = scalar_lea.vmem %s0, %s70
    %v72 = vld [vmem:[%s71] sm:%s4]
    %s73 = scalar_lea.vmem [#allocation1], 16
    %74 = vst [vmem:[%s73] sm:%s4] %v72
    %s75 = scalar_lea.vmem %s0, 2
    %v76 = vld [vmem:[%s75] sm:%s4]
    %s77 = scalar_lea.vmem [#allocation1], 8
    %78 = vst [vmem:[%s77] sm:%s4] %v76
    %v79 = vld [vmem:[%s0] sm:%s4]
    %80 = vst [vmem:[#allocation1] sm:%s4] %v79
    %v81 = vld [vmem:[#allocation1] ss:$8 sm:$0xf]
    %v82 = vld [vmem:[#allocation1] ss:$8 sm:$0xf0]
    %vm83 = vcmask 1047556
    %v84 = vsel %vm83, %v82, %v81
    %vm85 = vcmask 523264
    %86 = vst.msk [vmem:[#allocation0] sm:$0xf] %vm85, %v84
    %s87 = scalar_lea.vmem [#allocation0], 4
    %88 = vst.msk [vmem:[%s87] sm:$0xf0] %vm85, %v84
    %s89 = scalar_lea.vmem [#allocation1], 64
    %v90 = vld [vmem:[%s89] ss:$8 sm:$0xf]
    %s91 = scalar_lea.vmem [#allocation1], 64
    %v92 = vld [vmem:[%s91] ss:$8 sm:$0xf0]
    %vm93 = vcmask 1047556
    %v94 = vsel %vm93, %v92, %v90
    %vm95 = vcmask 523264
    %s96 = scalar_lea.vmem [#allocation0], 16
    %97 = vst.msk [vmem:[%s96] sm:$0xf] %vm95, %v94
    %s98 = scalar_lea.vmem [#allocation0], 20
    %99 = vst.msk [vmem:[%s98] sm:$0xf0] %vm95, %v94
    %s100 = scalar_lea.vmem [#allocation1], 1
    %v101 = vld [vmem:[%s100] ss:$8 sm:$0xf]
    %s102 = scalar_lea.vmem [#allocation1], 1
    %v103 = vld [vmem:[%s102] ss:$8 sm:$0xf0]
    %vm104 = vcmask 1047556
    %v105 = vsel %vm104, %v103, %v101
    %106 = vrot.lane.b32.xlu0 %v105, 64
    %v107 = vpop.permute.xlu0 %106
    %vm108 = vcmask 1048064
    %109 = vst.msk [vmem:[#allocation0] sm:$0xf] %vm108, %v107
    %s110 = scalar_lea.vmem [#allocation0], 4
    %111 = vst.msk [vmem:[%s110] sm:$0xf0] %vm108, %v107
    %s112 = scalar_lea.vmem [#allocation1], 65
    %v113 = vld [vmem:[%s112] ss:$8 sm:$0xf]
    %s114 = scalar_lea.vmem [#allocation1], 65
    %v115 = vld [vmem:[%s114] ss:$8 sm:$0xf0]
    %vm116 = vcmask 1047556
    %v117 = vsel %vm116, %v115, %v113
    %118 = vrot.lane.b32.xlu0 %v117, 64
    %v119 = vpop.permute.xlu0 %118
    %vm120 = vcmask 1048064
    %s121 = scalar_lea.vmem [#allocation0], 16
    %122 = vst.msk [vmem:[%s121] sm:$0xf] %vm120, %v119
    %s123 = scalar_lea.vmem [#allocation0], 20
    %124 = vst.msk [vmem:[%s123] sm:$0xf0] %vm120, %v119
    %s126 = sshll.u32 1, 4
    %s127 = ssub.s32 %s126, 1
    %v129 = vld [vmem:[#allocation0] sm:%s127]
    %s130 = sshll.u32 1, 4
    %s131 = ssub.s32 %s130, 1
    %132 = vst [vmem:[%s1] sm:%s131] %v129
    %s133 = scalar_lea.vmem [#allocation0], 8
    %v134 = vld [vmem:[%s133] sm:%s127]
    %s135 = sshll.u32 1, 4
    %s136 = ssub.s32 %s135, 1
    %s137 = scalar_lea.vmem %s1, 4
    %138 = vst [vmem:[%s137] sm:%s136] %v134
    %s139 = scalar_lea.vmem [#allocation0], 16
    %v140 = vld [vmem:[%s139] sm:%s127]
    %s141 = sshll.u32 1, 4
    %s142 = ssub.s32 %s141, 1
    %s143 = smul.addr 4, 2
    %s144 = scalar_lea.vmem %s1, %s143
    %145 = vst [vmem:[%s144] sm:%s142] %v140
    %s146 = scalar_lea.vmem [#allocation0], 24
    %v147 = vld [vmem:[%s146] sm:%s127]
    %s148 = sshll.u32 1, 4
    %s149 = ssub.s32 %s148, 1
    %s150 = smul.addr 4, 3
    %s151 = scalar_lea.vmem %s1, %s150
    %152 = vst [vmem:[%s151] sm:%s149] %v147

// kernel: neg.3
$region0: #{neg.3}
  #allocation0 [shape = 's32[1]{0}', space=sflag, size = 0x4, scoped, tag = 'scoped memory for neg.3']
  %s0 = inlined_call_operand.vmem [shape: f32[4,4,128], index: 0, kind: input, shape index: {}]
  %s1 = inlined_call_operand.vmem [shape: f32[4,4,128], index: 1, kind: output, shape index: {}]
  %v2 = vld [vmem:[%s0] sm:$0xf]
  %3 = xla_tuple %v2
  %4 = xla_tuple %3
  %v5 = vxor.u32 %v2, 2147483648
  %6 = xla_tuple %v5
  %7 = vst [vmem:[%s1] sm:$0xf] %v5
  %s8 = scalar_lea.vmem %s0, 4
  %v9 = vld [vmem:[%s8] sm:$0xf]
  %10 = xla_tuple %v9
  %11 = xla_tuple %10
  %v12 = vxor.u32 %v9, 2147483648
  %13 = xla_tuple %v12
  %s14 = scalar_lea.vmem %s1, 4
  %15 = vst [vmem:[%s14] sm:$0xf] %v12
  %s16 = scalar_lea.vmem %s0, 8
  %v17 = vld [vmem:[%s16] sm:$0xf]
  %18 = xla_tuple %v17
  %19 = xla_tuple %18
  %v20 = vxor.u32 %v17, 2147483648
  %21 = xla_tuple %v20
  %s22 = scalar_lea.vmem %s1, 8
  %23 = vst [vmem:[%s22] sm:$0xf] %v20
  %s24 = scalar_lea.vmem %s0, 12
  %v25 = vld [vmem:[%s24] sm:$0xf]
  %26 = xla_tuple %v25
  %27 = xla_tuple %26
  %v28 = vxor.u32 %v25, 2147483648
  %29 = xla_tuple %v28
  %s30 = scalar_lea.vmem %s1, 12
  %31 = vst [vmem:[%s30] sm:$0xf] %v28

// kernel: _lambda_.7
$region0: #{_lambda_.7}
  #allocation0 [shape = 'u32[]', space=smem, size = 0x4, offset = 0x4, fixed_abs, tag = 'smem constant byte address 0x4 - core index']
  #allocation1 [shape = 'u32[144,128]{1,0:T(1,128)}', space=vmem, size = 0x12000, scoped, tag = 'internal scratch']
  %s0 = inlined_call_operand.vmem [shape: f32[4,256], index: 0, kind: input, shape index: {}]
  %s1 = inlined_call_operand.vmem [shape: f32[4,256], index: 1, kind: input, shape index: {}]
  %s2 = inlined_call_operand.vmem [shape: f32[4,4,256], index: 2, kind: input, shape index: {}]
  %s3 = inlined_call_operand.vmem [shape: f32[4,4,256], index: 3, kind: input, shape index: {}]
  %s4 = inlined_call_operand.vmem [shape: f32[4,256], index: 4, kind: output, shape index: {}]
  %s5 = sld [smem:[#allocation0]]
  $region26: #{_lambda_.7} parent=0
    _
  %s7 = ssub.s32 1, %s5
  %s8 = scalar_select 0, %s7, %s5
  // Predicated region
  $region2: #{_lambda_.7} parent=0 // pred_check
    _
  $region3: #{_lambda_.7} parent=0 // pred_check_branch
    %10 = sbr.rel (0) target = $region5
  $region4: #{_lambda_.7} parent=0 // pred_region
    _
  $region5: #{_lambda_.7} parent=0 // pred_fallthru
    _
  // Predicated region
  $region6: #{_lambda_.7} parent=0 // pred_check
    _
  $region7: #{_lambda_.7} parent=0 // pred_check_branch
    %12 = sbr.rel (0) target = $region9
  $region8: #{_lambda_.7} parent=0 // pred_region
    _
  $region9: #{_lambda_.7} parent=0 // pred_fallthru
    _
  // Predicated region
  $region10: #{_lambda_.7} parent=0 // pred_check
    _
  $region11: #{_lambda_.7} parent=0 // pred_check_branch
    %14 = sbr.rel (0) target = $region13
  $region12: #{_lambda_.7} parent=0 // pred_region
    _
  $region13: #{_lambda_.7} parent=0 // pred_fallthru
    _
  // Predicated region
  $region14: #{_lambda_.7} parent=0 // pred_check
    _
  $region15: #{_lambda_.7} parent=0 // pred_check_branch
    %16 = sbr.rel (0) target = $region17
  $region16: #{_lambda_.7} parent=0 // pred_region
    _
  $region17: #{_lambda_.7} parent=0 // pred_fallthru
    _
  %v17 = vld [vmem:[%s0] sm:$0xff]
  %v18 = vld [vmem:[%s1] sm:$0xff]
  %v19 = vld [vmem:[%s2] sm:$0xff]
  %v20 = vld [vmem:[%s2 + $0x8] sm:$0xff]
  %v21 = vld [vmem:[%s2 + $0x10] sm:$0xff]
  %v22 = vld [vmem:[%s2 + $0x18] sm:$0xff]
  %v23 = vld [vmem:[%s3] sm:$0xff]
  %v24 = vld [vmem:[%s3 + $0x8] sm:$0xff]
  %v25 = vld [vmem:[%s3 + $0x10] sm:$0xff]
  %v26 = vld [vmem:[%s3 + $0x18] sm:$0xff]
  %v28 = vlaneseq
  %v29 = vshrl.u32 %v28, 7
  %v30 = vsub.s32 0, %v29
  %v31 = vrot.slane %v17, %v30
  %v32 = vlaneseq
  %v33 = vshrl.u32 %v32, 7
  %v34 = vsub.s32 4, %v33
  %v35 = vrot.slane %v17, %v34
  %v38 = vlaneseq
  %v39 = vshrl.u32 %v38, 7
  %v40 = vsub.s32 0, %v39
  %v41 = vrot.slane %v31, %v40
  %v42 = vlaneseq
  %v43 = vshrl.u32 %v42, 7
  %v44 = vsub.s32 0, %v43
  %v45 = vrot.slane %v35, %v44
  %v47 = vcombine.high %v19, %v19
  %v49 = vmul.f32 %v41, %v19
  %v50 = vmul.f32 %v45, %v47
  %v51 = vadd.f32 %v49, 0.0
  %v52 = vadd.f32 %v50, 0.0
  %v54 = vlaneseq
  %v55 = vshrl.u32 %v54, 7
  %v56 = vsub.s32 0, %v55
  %v57 = vrot.slane %v18, %v56
  %v58 = vlaneseq
  %v59 = vshrl.u32 %v58, 7
  %v60 = vsub.s32 4, %v59
  %v61 = vrot.slane %v18, %v60
  %v64 = vlaneseq
  %v65 = vshrl.u32 %v64, 7
  %v66 = vsub.s32 0, %v65
  %v67 = vrot.slane %v57, %v66
  %v68 = vlaneseq
  %v69 = vshrl.u32 %v68, 7
  %v70 = vsub.s32 0, %v69
  %v71 = vrot.slane %v61, %v70
  %v73 = vcombine.high %v23, %v23
  %v75 = vmul.f32 %v67, %v23
  %v76 = vmul.f32 %v71, %v73
  %v77 = vadd.f32 %v51, %v75
  %v78 = vadd.f32 %v52, %v76
  %v79 = vlaneseq
  %v80 = vshrl.u32 %v79, 7
  %v81 = vsub.s32 1, %v80
  %v82 = vrot.slane %v17, %v81
  %v83 = vlaneseq
  %v84 = vshrl.u32 %v83, 7
  %v85 = vsub.s32 5, %v84
  %v86 = vrot.slane %v17, %v85
  %v89 = vlaneseq
  %v90 = vshrl.u32 %v89, 7
  %v91 = vsub.s32 1, %v90
  %v92 = vrot.slane %v82, %v91
  %v93 = vlaneseq
  %v94 = vshrl.u32 %v93, 7
  %v95 = vsub.s32 1, %v94
  %v96 = vrot.slane %v86, %v95
  %v98 = vcombine.high %v20, %v20
  %v100 = vmul.f32 %v92, %v20
  %v101 = vmul.f32 %v96, %v98
  %v102 = vadd.f32 %v77, %v100
  %v103 = vadd.f32 %v78, %v101
  %v104 = vlaneseq
  %v105 = vshrl.u32 %v104, 7
  %v106 = vsub.s32 1, %v105
  %v107 = vrot.slane %v18, %v106
  %v108 = vlaneseq
  %v109 = vshrl.u32 %v108, 7
  %v110 = vsub.s32 5, %v109
  %v111 = vrot.slane %v18, %v110
  %v114 = vlaneseq
  %v115 = vshrl.u32 %v114, 7
  %v116 = vsub.s32 1, %v115
  %v117 = vrot.slane %v107, %v116
  %v118 = vlaneseq
  %v119 = vshrl.u32 %v118, 7
  %v120 = vsub.s32 1, %v119
  %v121 = vrot.slane %v111, %v120
  %v123 = vcombine.high %v24, %v24
  %v125 = vmul.f32 %v117, %v24
  %v126 = vmul.f32 %v121, %v123
  %v127 = vadd.f32 %v102, %v125
  %v128 = vadd.f32 %v103, %v126
  %v129 = vlaneseq
  %v130 = vshrl.u32 %v129, 7
  %v131 = vsub.s32 2, %v130
  %v132 = vrot.slane %v17, %v131
  %v133 = vlaneseq
  %v134 = vshrl.u32 %v133, 7
  %v135 = vsub.s32 6, %v134
  %v136 = vrot.slane %v17, %v135
  %v139 = vlaneseq
  %v140 = vshrl.u32 %v139, 7
  %v141 = vsub.s32 2, %v140
  %v142 = vrot.slane %v132, %v141
  %v143 = vlaneseq
  %v144 = vshrl.u32 %v143, 7
  %v145 = vsub.s32 2, %v144
  %v146 = vrot.slane %v136, %v145
  %v148 = vcombine.high %v21, %v21
  %v150 = vmul.f32 %v142, %v21
  %v151 = vmul.f32 %v146, %v148
  %v152 = vadd.f32 %v127, %v150
  %v153 = vadd.f32 %v128, %v151
  %v154 = vlaneseq
  %v155 = vshrl.u32 %v154, 7
  %v156 = vsub.s32 2, %v155
  %v157 = vrot.slane %v18, %v156
  %v158 = vlaneseq
  %v159 = vshrl.u32 %v158, 7
  %v160 = vsub.s32 6, %v159
  %v161 = vrot.slane %v18, %v160
  %v164 = vlaneseq
  %v165 = vshrl.u32 %v164, 7
  %v166 = vsub.s32 2, %v165
  %v167 = vrot.slane %v157, %v166
  %v168 = vlaneseq
  %v169 = vshrl.u32 %v168, 7
  %v170 = vsub.s32 2, %v169
  %v171 = vrot.slane %v161, %v170
  %v173 = vcombine.high %v25, %v25
  %v175 = vmul.f32 %v167, %v25
  %v176 = vmul.f32 %v171, %v173
  %v177 = vadd.f32 %v152, %v175
  %v178 = vadd.f32 %v153, %v176
  %v179 = vlaneseq
  %v180 = vshrl.u32 %v179, 7
  %v181 = vsub.s32 3, %v180
  %v182 = vrot.slane %v17, %v181
  %v183 = vlaneseq
  %v184 = vshrl.u32 %v183, 7
  %v185 = vsub.s32 7, %v184
  %v186 = vrot.slane %v17, %v185
  %v189 = vlaneseq
  %v190 = vshrl.u32 %v189, 7
  %v191 = vsub.s32 3, %v190
  %v192 = vrot.slane %v182, %v191
  %v193 = vlaneseq
  %v194 = vshrl.u32 %v193, 7
  %v195 = vsub.s32 3, %v194
  %v196 = vrot.slane %v186, %v195
  %v198 = vcombine.high %v22, %v22
  %v200 = vmul.f32 %v192, %v22
  %v201 = vmul.f32 %v196, %v198
  %v202 = vadd.f32 %v177, %v200
  %v203 = vadd.f32 %v178, %v201
  %v204 = vlaneseq
  %v205 = vshrl.u32 %v204, 7
  %v206 = vsub.s32 3, %v205
  %v207 = vrot.slane %v18, %v206
  %v208 = vlaneseq
  %v209 = vshrl.u32 %v208, 7
  %v210 = vsub.s32 7, %v209
  %v211 = vrot.slane %v18, %v210
  %v214 = vlaneseq
  %v215 = vshrl.u32 %v214, 7
  %v216 = vsub.s32 3, %v215
  %v217 = vrot.slane %v207, %v216
  %v218 = vlaneseq
  %v219 = vshrl.u32 %v218, 7
  %v220 = vsub.s32 3, %v219
  %v221 = vrot.slane %v211, %v220
  %v223 = vcombine.high %v26, %v26
  %v225 = vmul.f32 %v217, %v26
  %v226 = vmul.f32 %v221, %v223
  %v227 = vadd.f32 %v202, %v225
  %v228 = vadd.f32 %v203, %v226
  %v231 = vcombine.low %v227, %v228
  %233 = vst [vmem:[%s4] sm:$0xff] %v231
  // Predicated region
  $region18: #{_lambda_.7} parent=0 // pred_check
    _
  $region19: #{_lambda_.7} parent=0 // pred_check_branch
    %235 = sbr.rel (0) target = $region21
  $region20: #{_lambda_.7} parent=0 // pred_region
    _
  $region21: #{_lambda_.7} parent=0 // pred_fallthru
    _
  // Predicated region
  $region22: #{_lambda_.7} parent=0 // pred_check
    _
  $region23: #{_lambda_.7} parent=0 // pred_check_branch
    %237 = sbr.rel (0) target = $region25
  $region24: #{_lambda_.7} parent=0 // pred_region
    _
  $region25: #{_lambda_.7} parent=0 // pred_fallthru
    _

// kernel: _lambda_.8
$region0: #{_lambda_.8}
  #allocation0 [shape = 'u32[]', space=smem, size = 0x4, offset = 0x4, fixed_abs, tag = 'smem constant byte address 0x4 - core index']
  #allocation1 [shape = 'u32[144,128]{1,0:T(1,128)}', space=vmem, size = 0x12000, scoped, tag = 'internal scratch']
  %s0 = inlined_call_operand.vmem [shape: f32[4,256], index: 0, kind: input, shape index: {}]
  %s1 = inlined_call_operand.vmem [shape: f32[3,256], index: 1, kind: input, shape index: {}]
  %s2 = inlined_call_operand.vmem [shape: f32[16,4], index: 2, kind: input, shape index: {}]
  %s3 = inlined_call_operand.vmem [shape: f32[16,1], index: 3, kind: input, shape index: {}]
  %s4 = inlined_call_operand.vmem [shape: f32[4,256], index: 4, kind: output, shape index: {}]
  %s5 = sld [smem:[#allocation0]]
  $region26: #{_lambda_.8} parent=0
    _
  %s7 = ssub.s32 1, %s5
  %s8 = scalar_select 0, %s7, %s5
  // Predicated region
  $region2: #{_lambda_.8} parent=0 // pred_check
    _
  $region3: #{_lambda_.8} parent=0 // pred_check_branch
    %10 = sbr.rel (0) target = $region5
  $region4: #{_lambda_.8} parent=0 // pred_region
    _
  $region5: #{_lambda_.8} parent=0 // pred_fallthru
    _
  // Predicated region
  $region6: #{_lambda_.8} parent=0 // pred_check
    _
  $region7: #{_lambda_.8} parent=0 // pred_check_branch
    %12 = sbr.rel (0) target = $region9
  $region8: #{_lambda_.8} parent=0 // pred_region
    _
  $region9: #{_lambda_.8} parent=0 // pred_fallthru
    _
  // Predicated region
  $region10: #{_lambda_.8} parent=0 // pred_check
    _
  $region11: #{_lambda_.8} parent=0 // pred_check_branch
    %14 = sbr.rel (0) target = $region13
  $region12: #{_lambda_.8} parent=0 // pred_region
    _
  $region13: #{_lambda_.8} parent=0 // pred_fallthru
    _
  // Predicated region
  $region14: #{_lambda_.8} parent=0 // pred_check
    _
  $region15: #{_lambda_.8} parent=0 // pred_check_branch
    %16 = sbr.rel (0) target = $region17
  $region16: #{_lambda_.8} parent=0 // pred_region
    _
  $region17: #{_lambda_.8} parent=0 // pred_fallthru
    _
  %v17 = vld [vmem:[%s2] sm:$0xff]
  %v18 = vld [vmem:[%s2 + $0x8] sm:$0xff]
  %v19 = vld [vmem:[%s0] sm:$0xff]
  %v20 = vld [vmem:[%s3] sm:$0xff]
  %v21 = vld [vmem:[%s3 + $0x8] sm:$0xff]
  %23 = vset.pattern.permute.xlu0 0
  %24 = vperm.xlu0 %23, %v20
  %v25 = vpop.permute.xlu0 %24
  %28 = vset.pattern.permute.xlu0 0
  %29 = vperm.xlu0 %28, %v21
  %v30 = vpop.permute.xlu0 %29
  %v33 = vcombine.high %v19, %v19
  %vm34 = vcmask 31744
  %v36 = vsel %vm34, %v17, 0
  %v39 = vsel %vm34, %v18, 0
  %vm41 = vcmask 1043456
  %v42 = vsel %vm41, %v19, 0
  %v44 = vsel %vm41, %v33, 0
  %46 = vmatprep.subr.mxu0 0.0
  %47 = vmatpush1.msra.mxu0 0.0
  %48 = vmatprep.subr.mxu0 0.0
  %49 = vmatpush1.msra.mxu0 0.0
  %50 = vmatprep.subr.mxu0 0.0
  %51 = vmatpush1.msra.mxu0 0.0
  %52 = vmatprep.subr.mxu0 0.0
  %53 = vmatpush1.msra.mxu0 0.0
  %54 = vmatprep.subr.mxu0 0.0
  %55 = vmatpush1.msra.mxu0 0.0
  %56 = vmatprep.subr.mxu0 0.0
  %57 = vmatpush1.msra.mxu0 0.0
  %58 = vmatprep.subr.mxu0 0.0
  %59 = vmatpush1.msra.mxu0 0.0
  %60 = vmatprep.subr.mxu0 0.0
  %61 = vmatpush1.msra.mxu0 0.0
  %62 = vmatprep.subr.mxu0 0.0
  %63 = vmatpush1.msra.mxu0 0.0
  %64 = vmatprep.subr.mxu0 0.0
  %65 = vmatpush1.msra.mxu0 0.0
  %66 = vmatprep.subr.mxu0 0.0
  %67 = vmatpush1.msra.mxu0 0.0
  %68 = vmatprep.subr.mxu0 0.0
  %69 = vmatpush1.msra.mxu0 0.0
  %70 = vmatprep.subr.mxu0 0.0
  %71 = vmatpush1.msra.mxu0 0.0
  %72 = vmatprep.subr.mxu0 0.0
  %73 = vmatpush1.msra.mxu0 0.0
  %74 = vmatprep.subr.mxu0 0.0
  %75 = vmatpush1.msra.mxu0 0.0
  %76 = vmatprep.subr.mxu0 %v44
  %77 = vmatpush1.msra.mxu0 %v42
  %78 = vmatprep.subr.mxu0 0.0
  %79 = vmatpush2.msra.mxu0 0.0
  %80 = vmatprep.subr.mxu0 0.0
  %81 = vmatpush2.msra.mxu0 0.0
  %82 = vmatprep.subr.mxu0 0.0
  %83 = vmatpush2.msra.mxu0 0.0
  %84 = vmatprep.subr.mxu0 0.0
  %85 = vmatpush2.msra.mxu0 0.0
  %86 = vmatprep.subr.mxu0 0.0
  %87 = vmatpush2.msra.mxu0 0.0
  %88 = vmatprep.subr.mxu0 0.0
  %89 = vmatpush2.msra.mxu0 0.0
  %90 = vmatprep.subr.mxu0 0.0
  %91 = vmatpush2.msra.mxu0 0.0
  %92 = vmatprep.subr.mxu0 0.0
  %93 = vmatpush2.msra.mxu0 0.0
  %94 = vmatprep.subr.mxu0 0.0
  %95 = vmatpush2.msra.mxu0 0.0
  %96 = vmatprep.subr.mxu0 0.0
  %97 = vmatpush2.msra.mxu0 0.0
  %98 = vmatprep.subr.mxu0 0.0
  %99 = vmatpush2.msra.mxu0 0.0
  %100 = vmatprep.subr.mxu0 0.0
  %101 = vmatpush2.msra.mxu0 0.0
  %102 = vmatprep.subr.mxu0 0.0
  %103 = vmatpush2.msra.mxu0 0.0
  %104 = vmatprep.subr.mxu0 0.0
  %105 = vmatpush2.msra.mxu0 0.0
  %106 = vmatprep.subr.mxu0 0.0
  %107 = vmatpush2.msra.mxu0 0.0
  %108 = vmatprep.subr.mxu0 0.0
  %109 = vmatpush2.msra.mxu0 0.0
  %110 = vmatprep.mubr.f32.mxu0 0.0
  %111 = vmatmul.mubr.f32.gmra.mxu0 %v36
  %v112 = vpop.f32.mrf.mxu0
  %v113 = vadd.f32 %v25, %v112
  %v114 = vpop.f32.mrf.mxu0
  %v115 = vadd.f32 %v25, %v114
  %116 = vmatprep.mubr.f32.mxu0 0.0
  %117 = vmatmul.mubr.f32.gmra.mxu0 %v39
  %v118 = vpop.f32.mrf.mxu0
  %v119 = vadd.f32 %v30, %v118
  %v120 = vpop.f32.mrf.mxu0
  %v121 = vadd.f32 %v30, %v120
  %122 = vdwg.mxu0
  %v123 = vtanh.pop %v113
  %v124 = vtanh.pop %v115
  %v125 = vtanh.pop %v119
  %v126 = vtanh.pop %v121
  %v127 = vld [vmem:[%s1] sm:$0x77]
  %v129 = vlaneseq
  %v130 = vshrl.u32 %v129, 7
  %v131 = vsub.s32 0, %v130
  %v132 = vrot.slane %v127, %v131
  %v133 = vlaneseq
  %v134 = vshrl.u32 %v133, 7
  %v135 = vsub.s32 4, %v134
  %v136 = vrot.slane %v127, %v135
  %v139 = vlaneseq
  %v140 = vshrl.u32 %v139, 7
  %v141 = vsub.s32 0, %v140
  %v142 = vrot.slane %v132, %v141
  %v143 = vlaneseq
  %v144 = vshrl.u32 %v143, 7
  %v145 = vsub.s32 0, %v144
  %v146 = vrot.slane %v136, %v145
  %v147 = vmul.f32 %v123, %v142
  %v148 = vmul.f32 %v124, %v146
  %v151 = vrot.slane %v147, 4
  %v152 = vrot.slane %v148, 4
  %v155 = vadd.f32 %v123, %v151
  %v156 = vadd.f32 %v124, %v152
  %v157 = vlaneseq
  %v158 = vshrl.u32 %v157, 7
  %v159 = vsub.s32 1, %v158
  %v160 = vrot.slane %v127, %v159
  %v161 = vlaneseq
  %v162 = vshrl.u32 %v161, 7
  %v163 = vsub.s32 5, %v162
  %v164 = vrot.slane %v127, %v163
  %v167 = vlaneseq
  %v168 = vshrl.u32 %v167, 7
  %v169 = vsub.s32 1, %v168
  %v170 = vrot.slane %v160, %v169
  %v171 = vlaneseq
  %v172 = vshrl.u32 %v171, 7
  %v173 = vsub.s32 1, %v172
  %v174 = vrot.slane %v164, %v173
  %v175 = vmul.f32 %v125, %v170
  %v176 = vmul.f32 %v126, %v174
  %v177 = vadd.f32 %v155, %v175
  %v178 = vadd.f32 %v156, %v176
  %v179 = vlaneseq
  %v180 = vshrl.u32 %v179, 7
  %v181 = vsub.s32 2, %v180
  %v182 = vrot.slane %v127, %v181
  %v183 = vlaneseq
  %v184 = vshrl.u32 %v183, 7
  %v185 = vsub.s32 6, %v184
  %v186 = vrot.slane %v127, %v185
  %v189 = vlaneseq
  %v190 = vshrl.u32 %v189, 7
  %v191 = vsub.s32 2, %v190
  %v192 = vrot.slane %v182, %v191
  %v193 = vlaneseq
  %v194 = vshrl.u32 %v193, 7
  %v195 = vsub.s32 2, %v194
  %v196 = vrot.slane %v186, %v195
  %v197 = vmul.f32 %v125, %v192
  %v198 = vmul.f32 %v126, %v196
  %v201 = vrot.slane %v197, 4
  %v202 = vrot.slane %v198, 4
  %v205 = vadd.f32 %v177, %v201
  %v206 = vadd.f32 %v178, %v202
  %v209 = vcombine.low %v205, %v206
  %211 = vst [vmem:[%s4] sm:$0xff] %v209
  // Predicated region
  $region18: #{_lambda_.8} parent=0 // pred_check
    _
  $region19: #{_lambda_.8} parent=0 // pred_check_branch
    %213 = sbr.rel (0) target = $region21
  $region20: #{_lambda_.8} parent=0 // pred_region
    _
  $region21: #{_lambda_.8} parent=0 // pred_fallthru
    _
  // Predicated region
  $region22: #{_lambda_.8} parent=0 // pred_check
    _
  $region23: #{_lambda_.8} parent=0 // pred_check_branch
    %215 = sbr.rel (0) target = $region25
  $region24: #{_lambda_.8} parent=0 // pred_region
    _
  $region25: #{_lambda_.8} parent=0 // pred_fallthru
    _

// kernel: _lambda_.9
$region0: #{_lambda_.9}
  #allocation0 [shape = 'u32[]', space=smem, size = 0x4, offset = 0x4, fixed_abs, tag = 'smem constant byte address 0x4 - core index']
  #allocation1 [shape = 'u32[144,128]{1,0:T(1,128)}', space=vmem, size = 0x12000, scoped, tag = 'internal scratch']
  %s0 = inlined_call_operand.vmem [shape: f32[4,128], index: 0, kind: input, shape index: {}]
  %s1 = inlined_call_operand.vmem [shape: f32[4,128], index: 1, kind: input, shape index: {}]
  %s2 = inlined_call_operand.vmem [shape: f32[4,4,128], index: 2, kind: input, shape index: {}]
  %s3 = inlined_call_operand.vmem [shape: f32[4,4,128], index: 3, kind: input, shape index: {}]
  %s4 = inlined_call_operand.vmem [shape: f32[4,128], index: 4, kind: output, shape index: {}]
  %s5 = sld [smem:[#allocation0]]
  $region26: #{_lambda_.9} parent=0
    _
  %s7 = ssub.s32 1, %s5
  %s8 = scalar_select 0, %s7, %s5
  // Predicated region
  $region2: #{_lambda_.9} parent=0 // pred_check
    _
  $region3: #{_lambda_.9} parent=0 // pred_check_branch
    %10 = sbr.rel (0) target = $region5
  $region4: #{_lambda_.9} parent=0 // pred_region
    _
  $region5: #{_lambda_.9} parent=0 // pred_fallthru
    _
  // Predicated region
  $region6: #{_lambda_.9} parent=0 // pred_check
    _
  $region7: #{_lambda_.9} parent=0 // pred_check_branch
    %12 = sbr.rel (0) target = $region9
  $region8: #{_lambda_.9} parent=0 // pred_region
    _
  $region9: #{_lambda_.9} parent=0 // pred_fallthru
    _
  // Predicated region
  $region10: #{_lambda_.9} parent=0 // pred_check
    _
  $region11: #{_lambda_.9} parent=0 // pred_check_branch
    %14 = sbr.rel (0) target = $region13
  $region12: #{_lambda_.9} parent=0 // pred_region
    _
  $region13: #{_lambda_.9} parent=0 // pred_fallthru
    _
  // Predicated region
  $region14: #{_lambda_.9} parent=0 // pred_check
    _
  $region15: #{_lambda_.9} parent=0 // pred_check_branch
    %16 = sbr.rel (0) target = $region17
  $region16: #{_lambda_.9} parent=0 // pred_region
    _
  $region17: #{_lambda_.9} parent=0 // pred_fallthru
    _
  %v17 = vld [vmem:[%s0] sm:$0xf]
  %v18 = vld [vmem:[%s1] sm:$0xf]
  %v19 = vld [vmem:[%s2] sm:$0xf]
  %v20 = vld [vmem:[%s2 + $0x4] sm:$0xf]
  %v21 = vld [vmem:[%s2 + $0x8] sm:$0xf]
  %v22 = vld [vmem:[%s2 + $0xc] sm:$0xf]
  %v23 = vld [vmem:[%s3] sm:$0xf]
  %v24 = vld [vmem:[%s3 + $0x4] sm:$0xf]
  %v25 = vld [vmem:[%s3 + $0x8] sm:$0xf]
  %v26 = vld [vmem:[%s3 + $0xc] sm:$0xf]
  %v27 = vlaneseq
  %v28 = vshrl.u32 %v27, 7
  %v29 = vsub.s32 0, %v28
  %v30 = vrot.slane %v17, %v29
  %v31 = vmul.f32 %v30, %v19
  %v32 = vadd.f32 %v31, 0.0
  %v33 = vlaneseq
  %v34 = vshrl.u32 %v33, 7
  %v35 = vsub.s32 0, %v34
  %v36 = vrot.slane %v18, %v35
  %v37 = vmul.f32 %v36, %v23
  %v38 = vadd.f32 %v32, %v37
  %v39 = vlaneseq
  %v40 = vshrl.u32 %v39, 7
  %v41 = vsub.s32 1, %v40
  %v42 = vrot.slane %v17, %v41
  %v43 = vmul.f32 %v42, %v20
  %v44 = vadd.f32 %v38, %v43
  %v45 = vlaneseq
  %v46 = vshrl.u32 %v45, 7
  %v47 = vsub.s32 1, %v46
  %v48 = vrot.slane %v18, %v47
  %v49 = vmul.f32 %v48, %v24
  %v50 = vadd.f32 %v44, %v49
  %v51 = vlaneseq
  %v52 = vshrl.u32 %v51, 7
  %v53 = vsub.s32 2, %v52
  %v54 = vrot.slane %v17, %v53
  %v55 = vmul.f32 %v54, %v21
  %v56 = vadd.f32 %v50, %v55
  %v57 = vlaneseq
  %v58 = vshrl.u32 %v57, 7
  %v59 = vsub.s32 2, %v58
  %v60 = vrot.slane %v18, %v59
  %v61 = vmul.f32 %v60, %v25
  %v62 = vadd.f32 %v56, %v61
  %v63 = vlaneseq
  %v64 = vshrl.u32 %v63, 7
  %v65 = vsub.s32 3, %v64
  %v66 = vrot.slane %v17, %v65
  %v67 = vmul.f32 %v66, %v22
  %v68 = vadd.f32 %v62, %v67
  %v69 = vlaneseq
  %v70 = vshrl.u32 %v69, 7
  %v71 = vsub.s32 3, %v70
  %v72 = vrot.slane %v18, %v71
  %v73 = vmul.f32 %v72, %v26
  %v74 = vadd.f32 %v68, %v73
  %75 = vst [vmem:[%s4] sm:$0xf] %v74
  // Predicated region
  $region18: #{_lambda_.9} parent=0 // pred_check
    _
  $region19: #{_lambda_.9} parent=0 // pred_check_branch
    %77 = sbr.rel (0) target = $region21
  $region20: #{_lambda_.9} parent=0 // pred_region
    _
  $region21: #{_lambda_.9} parent=0 // pred_fallthru
    _
  // Predicated region
  $region22: #{_lambda_.9} parent=0 // pred_check
    _
  $region23: #{_lambda_.9} parent=0 // pred_check_branch
    %79 = sbr.rel (0) target = $region25
  $region24: #{_lambda_.9} parent=0 // pred_region
    _
  $region25: #{_lambda_.9} parent=0 // pred_fallthru
    _

</llo_original>
